<compile_context>
chip_gen: v7x
topology: tpu7x:2x2x1
jax: 0.10.0
libtpu: 0.0.40
codegen_flags: <defaults>
</compile_context>

<pallas_src>
import functools
import math

import jax
import jax.numpy as jnp
from jax import lax
from jax.experimental import pallas as pl
from jax.experimental.pallas import tpu as pltpu

# Large finite negative mask value (avoids exp(-inf - (-inf)) NaNs that a true
# -inf mask can produce if a row's first tile were ever fully masked).
_MASK_VALUE = -1e30


def _pick_tile(dim, target, minimum):
    """Largest power-of-two tile <= target that divides `dim`, else the full
    dim (a full-dim block is always (8,128)-legal).  `minimum` keeps lane /
    sublane tiles aligned (128 for lane dims, 8 for sublane dims).
    TODO(synk): for large shapes not divisible by any candidate, switch to a
    pl.cdiv grid + in-kernel remainder masking instead of a full-dim block."""
    t = target
    while t >= minimum:
        if dim % t == 0:
            return t
        t //= 2
    return dim


# ----------------------------- tiled projection -----------------------------
def _matmul_kernel(x_ref, w_ref, o_ref, acc_ref):
    # x block: (tm, tk); w block: (tk, tn) -- weight pre-transposed in wrapper.
    @pl.when(pl.program_id(2) == 0)
    def _init():
        acc_ref[...] = jnp.zeros_like(acc_ref)

    acc_ref[...] += jnp.dot(x_ref[...], w_ref[...],
                            preferred_element_type=jnp.float32)

    @pl.when(pl.program_id(2) == pl.num_programs(2) - 1)
    def _store():
        o_ref[...] = acc_ref[...].astype(o_ref.dtype)


def linear_no_bias(x2d, weight, *, tm_target=512, tn_target=512, tk_target=512):
    """x2d: (M, K); weight: (N, K) as in nn.Linear.  Returns (M, N) = x @ W^T.

    The weight is transposed once here (in a real model this is done at load
    time) so the kernel contracts a standard (tm,tk)x(tk,tn) matmul.  512
    tiles keep each grid step MXU-bound rather than overhead-bound while the
    double-buffered working set stays ~7 MiB (fits every generation's default
    scoped VMEM, incl. v7x's 64 MiB physical)."""
    M, K = x2d.shape
    N = weight.shape[0]
    w_kn = weight.T                     # (K, N), done once per call

    tm = _pick_tile(M, tm_target, 8)
    tn = _pick_tile(N, tn_target, 128)
    tk = _pick_tile(K, tk_target, 128)

    cost = pl.CostEstimate(
        flops=int(2 * M * N * K),
        transcendentals=0,
        bytes_accessed=int((M * K + K * N + M * N) * x2d.dtype.itemsize))

    return pl.pallas_call(
        _matmul_kernel,
        out_shape=jax.ShapeDtypeStruct((M, N), x2d.dtype),
        grid=(M // tm, N // tn, K // tk),
        in_specs=[
            pl.BlockSpec((tm, tk), lambda i, j, kk: (i, kk)),
            pl.BlockSpec((tk, tn), lambda i, j, kk: (kk, j)),
        ],
        out_specs=pl.BlockSpec((tm, tn), lambda i, j, kk: (i, j)),
        scratch_shapes=[pltpu.VMEM((tm, tn), jnp.float32)],
        compiler_params=pltpu.CompilerParams(
            dimension_semantics=("parallel", "parallel", "arbitrary")),
        cost_estimate=cost,
    )(x2d, w_kn)


# --------------------------- flash-style attention ---------------------------
def _flash_attention_kernel(qi_tab_ref, ki_tab_ref,      # scalar-prefetch (SMEM)
                            q_ref, k_ref, v_ref, o_ref,  # blocks (VMEM)
                            m_ref, l_ref, acc_ref,       # scratch (VMEM)
                            *, scale, nk):
    groups = q_ref.shape[1]
    tq = q_ref.shape[2]
    tk = k_ref.shape[2]

    p_idx = pl.program_id(2)
    qi = qi_tab_ref[p_idx]
    ki = ki_tab_ref[p_idx]
    q_start = qi * tq
    k_start = ki * tk

    @pl.when(ki == 0)
    def _init():
        m_ref[...] = jnp.full(m_ref.shape, _MASK_VALUE, m_ref.dtype)
        l_ref[...] = jnp.zeros(l_ref.shape, l_ref.dtype)
        acc_ref[...] = jnp.zeros(acc_ref.shape, acc_ref.dtype)

    k = k_ref[0, 0]          # (tk, D)
    v = v_ref[0, 0]          # (tk, D)

    # Causal mask for this (tq, tk) tile; built once per step and shared by
    # all `groups` query heads of this kv-head.
    q_pos = q_start + lax.broadcasted_iota(jnp.int32, (tq, tk), 0)
    k_pos = k_start + lax.broadcasted_iota(jnp.int32, (tq, tk), 1)
    visible = q_pos >= k_pos

    # Unrolled GQA loop: one K/V tile DMA serves all `groups` query heads.
    for g in range(groups):
        qg = q_ref[0, g]                                   # (tq, D)
        s = lax.dot_general(qg, k,
                            dimension_numbers=(((1,), (1,)), ((), ())),
                            preferred_element_type=jnp.float32)   # (tq, tk)
        s = s * scale                                      # fp32, matches torch
        s = jnp.where(visible, s, _MASK_VALUE)

        m_prev = m_ref[g]                                  # (tq, 1)
        m_new = jnp.maximum(m_prev, jnp.max(s, axis=-1, keepdims=True))
        alpha = jnp.exp(m_prev - m_new)
        p = jnp.exp(s - m_new)
        l_ref[g] = alpha * l_ref[g] + jnp.sum(p, axis=-1, keepdims=True)
        acc_ref[g] = alpha * acc_ref[g] + jnp.dot(
            p.astype(v.dtype), v, preferred_element_type=jnp.float32)
        m_ref[g] = m_new

    # Last kv tile that intersects the causal band of this q tile.
    last_ki = jnp.minimum(nk - 1, (q_start + tq - 1) // tk)

    @pl.when(ki == last_ki)
    def _finalize():
        for g in range(groups):
            inv_l = pl.reciprocal(l_ref[g])                # exact; once per q tile
            o_ref[0, g] = (acc_ref[g] * inv_l).astype(o_ref.dtype)


def flash_attention(q, k, v, *, tq_target=256, tk_target=256):
    """q: (B, H, S, D); k, v: (B, KVH, S, D).  Causal attention, GQA aware."""
    B, H, S, D = q.shape
    KVH = k.shape[1]
    groups = H // KVH
    TQ = _pick_tile(S, tq_target, 8)
    TK = _pick_tile(S, tk_target, 8)
    NQ, NK = S // TQ, S // TK
    scale = 1.0 / math.sqrt(D)

    # Lower-triangular (q_tile, kv_tile) pair table, q-tile major so the
    # accumulator / output block stays resident across the kv steps of one
    # q tile.  Fully-masked tiles are never enumerated -> no DMA, no grid step.
    qi_list, ki_list = [], []
    for qi in range(NQ):
        last = min(NK - 1, (qi * TQ + TQ - 1) // TK)
        for ki in range(last + 1):
            qi_list.append(qi)
            ki_list.append(ki)
    npairs = len(qi_list)
    qi_tab = jnp.asarray(qi_list, dtype=jnp.int32)
    ki_tab = jnp.asarray(ki_list, dtype=jnp.int32)

    kernel = functools.partial(_flash_attention_kernel, scale=scale, nk=NK)

    itemsize = q.dtype.itemsize
    cost = pl.CostEstimate(
        flops=int(4 * B * KVH * npairs * groups * TQ * TK * D),
        transcendentals=int(B * KVH * npairs * groups * TQ * TK),
        bytes_accessed=int((2 * q.size + 2 * B * KVH * npairs * TK * D) * itemsize))

    grid_spec = pltpu.PrefetchScalarGridSpec(
        num_scalar_prefetch=2,
        grid=(B, KVH, npairs),
        in_specs=[
            # Q block covers the whole GQA group of this kv-head.
            pl.BlockSpec((1, groups, TQ, D),
                         lambda b, kvh, p, qt, kt: (b, kvh, qt[p], 0)),
            # K/V indexed by kv-head and kv tile only.
            pl.BlockSpec((1, 1, TK, D),
                         lambda b, kvh, p, qt, kt: (b, kvh, kt[p], 0)),
            pl.BlockSpec((1, 1, TK, D),
                         lambda b, kvh, p, qt, kt: (b, kvh, kt[p], 0)),
        ],
        out_specs=pl.BlockSpec((1, groups, TQ, D),
                               lambda b, kvh, p, qt, kt: (b, kvh, qt[p], 0)),
        scratch_shapes=[
            pltpu.VMEM((groups, TQ, 1), jnp.float32),   # running max m
            pltpu.VMEM((groups, TQ, 1), jnp.float32),   # running denom l
            pltpu.VMEM((groups, TQ, D), jnp.float32),   # running output acc
        ])

    return pl.pallas_call(
        kernel,
        out_shape=jax.ShapeDtypeStruct((B, H, S, D), q.dtype),
        grid_spec=grid_spec,
        compiler_params=pltpu.CompilerParams(
            dimension_semantics=("parallel", "parallel", "arbitrary")),
        cost_estimate=cost,
    )(qi_tab, ki_tab, q, k, v)


# ------------------------------ full forward ---------------------------------
def jamba_attention_forward(hidden_states, params, config):
    """hidden_states: (B, S, hidden). Returns attn_output: (B, S, hidden)."""
    B, S, hidden = hidden_states.shape
    H = config["num_attention_heads"]
    KVH = config["num_key_value_heads"]
    D = hidden // H

    x2d = hidden_states.reshape(B * S, hidden)

    q = linear_no_bias(x2d, params["q_proj"])      # (B*S, H*D)
    k = linear_no_bias(x2d, params["k_proj"])      # (B*S, KVH*D)
    v = linear_no_bias(x2d, params["v_proj"])      # (B*S, KVH*D)

    # TODO(synk): fuse these head-layout transposes into the projection
    # out_specs / o_proj in_spec once head_dim is lane-aligned (128); with the
    # tiny test head_dim=8 the fused blocks would violate the (8,128) tiling
    # rule, so they stay as XLA transposes here.
    q = q.reshape(B, S, H, D).transpose(0, 2, 1, 3)     # (B, H, S, D)
    k = k.reshape(B, S, KVH, D).transpose(0, 2, 1, 3)   # (B, KVH, S, D)
    v = v.reshape(B, S, KVH, D).transpose(0, 2, 1, 3)   # (B, KVH, S, D)

    attn = flash_attention(q, k, v)                     # (B, H, S, D)

    attn = attn.transpose(0, 2, 1, 3).reshape(B * S, H * D)
    out = linear_no_bias(attn, params["o_proj"])        # (B*S, hidden)
    return out.reshape(B, S, hidden)


# ------------------------------ reference (JAX) -------------------------------
def reference_forward(hidden_states, params, config):
    B, S, hidden = hidden_states.shape
    H = config["num_attention_heads"]
    KVH = config["num_key_value_heads"]
    D = hidden // H
    groups = H // KVH

    q = hidden_states @ params["q_proj"].T
    k = hidden_states @ params["k_proj"].T
    v = hidden_states @ params["v_proj"].T
    q = q.reshape(B, S, H, D).transpose(0, 2, 1, 3)
    k = k.reshape(B, S, KVH, D).transpose(0, 2, 1, 3)
    v = v.reshape(B, S, KVH, D).transpose(0, 2, 1, 3)
    k = jnp.repeat(k, groups, axis=1)
    v = jnp.repeat(v, groups, axis=1)

    w = jnp.einsum("bhqd,bhkd->bhqk", q, k) / math.sqrt(D)
    neg = jnp.asarray(jnp.finfo(jnp.float32).min, dtype=jnp.float32)
    causal = jnp.tril(jnp.ones((S, S), dtype=bool))[None, None]
    w = w + jnp.where(causal, 0.0, neg)
    w = jax.nn.softmax(w.astype(jnp.float32), axis=-1).astype(q.dtype)
    o = jnp.einsum("bhqk,bhkd->bhqd", w, v)
    o = o.transpose(0, 2, 1, 3).reshape(B, S, hidden)
    return o @ params["o_proj"].T


# ---------------------------------- main --------------------------------------
if __name__ == "__main__":
    config = dict(
        hidden_size=32,
        num_attention_heads=4,
        num_key_value_heads=2,
        attention_dropout=0.0,
    )
    B, S = 2, 16
    hidden = config["hidden_size"]
    H = config["num_attention_heads"]
    KVH = config["num_key_value_heads"]
    D = hidden // H

    key = jax.random.PRNGKey(0)
    k_x, k_q, k_k, k_v, k_o = jax.random.split(key, 5)

    hidden_states = jax.random.normal(k_x, (B, S, hidden), dtype=jnp.float32)

    scale = 1.0 / math.sqrt(hidden)
    params = {
        "q_proj": jax.random.normal(k_q, (H * D, hidden), dtype=jnp.float32) * scale,
        "k_proj": jax.random.normal(k_k, (KVH * D, hidden), dtype=jnp.float32) * scale,
        "v_proj": jax.random.normal(k_v, (KVH * D, hidden), dtype=jnp.float32) * scale,
        "o_proj": jax.random.normal(k_o, (hidden, H * D), dtype=jnp.float32) * scale,
    }

    out = jamba_attention_forward(hidden_states, params, config)
    out = jax.block_until_ready(out)

    ref = reference_forward(hidden_states, params, config)
    assert out.shape == (B, S, hidden)
    max_err = float(jnp.max(jnp.abs(out - ref)))
    assert jnp.allclose(out, ref, atol=2e-3, rtol=2e-3), (
        f"mismatch vs reference (max abs err {max_err})")

    print("KERNEL_OK")
</pallas_src>

<mosaic_0001>
module attributes {stable_mosaic.version = 11 : i64} {
  func.func @_matmul_kernel(%arg0: i32, %arg1: i32, %arg2: i32, %arg3: memref<32x32xf32, #tpu.memory_space<vmem>>, %arg4: memref<32x32xf32, #tpu.memory_space<vmem>>, %arg5: memref<32x32xf32, #tpu.memory_space<vmem>>, %arg6: memref<32x32xf32, #tpu.memory_space<vmem>>) attributes {dimension_semantics = [#tpu.dimension_semantics<parallel>, #tpu.dimension_semantics<parallel>, #tpu.dimension_semantics<arbitrary>], iteration_bounds = array<i64: 1, 1, 1>, scalar_prefetch = 0 : i64, scratch_operands = 1 : i64, tpu.core_type = #tpu.core_type<tc>, window_params = [{transform_indices = @transform_0, window_bounds = array<i64: 32, 32>}, {transform_indices = @transform_1, window_bounds = array<i64: 32, 32>}, {transform_indices = @transform_2, window_bounds = array<i64: 32, 32>}]} {
    %c0_i32 = arith.constant 0 : i32
    %0 = arith.cmpi eq, %arg2, %c0_i32 : i32
    %1 = arith.extui %0 : i1 to i32
    %c0_i32_0 = arith.constant 0 : i32
    %2 = arith.cmpi ne, %1, %c0_i32_0 : i32
    scf.if %2 {
      %cst_10 = arith.constant 0.000000e+00 : f32
      %12 = vector.broadcast %cst_10 : f32 to vector<32x32xf32>
      %c0_11 = arith.constant 0 : index
      %c0_12 = arith.constant 0 : index
      %13 = vector.load %arg6[%c0_11, %c0_12] : memref<32x32xf32, #tpu.memory_space<vmem>>, vector<32x32xf32>
      tpu.vector_store %arg6[%c0_11, %c0_12], %12 {strides = array<i32>} : memref<32x32xf32, #tpu.memory_space<vmem>>, vector<32x32xf32>,
    } else {
    }
    %c0 = arith.constant 0 : index
    %c0_1 = arith.constant 0 : index
    %3 = vector.load %arg6[%c0, %c0_1] : memref<32x32xf32, #tpu.memory_space<vmem>>, vector<32x32xf32>
    %c0_2 = arith.constant 0 : index
    %c0_3 = arith.constant 0 : index
    %4 = vector.load %arg3[%c0_2, %c0_3] : memref<32x32xf32, #tpu.memory_space<vmem>>, vector<32x32xf32>
    %c0_4 = arith.constant 0 : index
    %c0_5 = arith.constant 0 : index
    %5 = vector.load %arg4[%c0_4, %c0_5] : memref<32x32xf32, #tpu.memory_space<vmem>>, vector<32x32xf32>
    %cst = arith.constant dense<0.000000e+00> : vector<32x32xf32>
    %6 = tpu.matmul %4, %5, %cst {dimension_numbers = #tpu.dot_dimension_numbers<[1], [0], [0], [1], [0, 0, 1, 1], [], []>} : vector<32x32xf32>, vector<32x32xf32>, vector<32x32xf32> -> vector<32x32xf32>
    %7 = arith.addf %3, %6 : vector<32x32xf32>
    %c0_6 = arith.constant 0 : index
    %c0_7 = arith.constant 0 : index
    %8 = vector.load %arg6[%c0_6, %c0_7] : memref<32x32xf32, #tpu.memory_space<vmem>>, vector<32x32xf32>
    tpu.vector_store %arg6[%c0_6, %c0_7], %7 {strides = array<i32>} : memref<32x32xf32, #tpu.memory_space<vmem>>, vector<32x32xf32>,
    %c0_i32_8 = arith.constant 0 : i32
    %9 = arith.cmpi eq, %arg2, %c0_i32_8 : i32
    %10 = arith.extui %9 : i1 to i32
    %c0_i32_9 = arith.constant 0 : i32
    %11 = arith.cmpi ne, %10, %c0_i32_9 : i32
    scf.if %11 {
      %c0_10 = arith.constant 0 : index
      %c0_11 = arith.constant 0 : index
      %12 = vector.load %arg6[%c0_10, %c0_11] : memref<32x32xf32, #tpu.memory_space<vmem>>, vector<32x32xf32>
      %c0_12 = arith.constant 0 : index
      %c0_13 = arith.constant 0 : index
      %13 = vector.load %arg5[%c0_12, %c0_13] : memref<32x32xf32, #tpu.memory_space<vmem>>, vector<32x32xf32>
      tpu.vector_store %arg5[%c0_12, %c0_13], %12 {strides = array<i32>} : memref<32x32xf32, #tpu.memory_space<vmem>>, vector<32x32xf32>,
    } else {
    }
    return
  }
  func.func @transform_0(%arg0: i32, %arg1: i32, %arg2: i32) -> (i32, i32) {
    %c0_i32 = arith.constant 0 : i32
    return %arg0, %arg2 : i32, i32
  }
  func.func @transform_1(%arg0: i32, %arg1: i32, %arg2: i32) -> (i32, i32) {
    %c0_i32 = arith.constant 0 : i32
    return %arg2, %arg1 : i32, i32
  }
  func.func @transform_2(%arg0: i32, %arg1: i32, %arg2: i32) -> (i32, i32) {
    %c0_i32 = arith.constant 0 : i32
    return %arg0, %arg1 : i32, i32
  }
}

</mosaic_0001>

<llo_original>
// kernel: tpu_custom_call.1
$region0: #{tpu_custom_call.1}
  #allocation0 [shape = 'u32[]', space=smem, size = 0x4, offset = 0x4, fixed_abs, tag = 'smem constant byte address 0x4 - core index']
  #allocation1 [shape = 'u32[144,128]{1,0:T(1,128)}', space=vmem, size = 0x12000, scoped, tag = 'internal scratch']
  #allocation2 [shape = 'f32[32,32]{1,0:T(8,128)}', space=vmem, size = 0x4000, scoped, tag = 'scratch operand']
  %s0 = inlined_call_operand.hbm [shape: f32[32,32], index: 0, kind: input, shape index: {}]
  %s1 = inlined_call_operand.hbm [shape: f32[32,32], index: 1, kind: input, shape index: {}]
  %s2 = inlined_call_operand.hbm [shape: f32[32,32], index: 2, kind: output, shape index: {}]
  %s3 = sld [smem:[#allocation0]]
  $region34: #{tpu_custom_call.1} parent=0
    _
  %s5 = ssub.s32 1, %s3
  %s6 = scalar_select 0, %s5, %s3
  $region1: #{tpu_custom_call.1} parent=0
    #allocation3 [shape = 'u8[16384]{0}', space=vmem, size = 0x4000, scoped, tag = 'input window, operand 0, single buffered']
    #allocation4 [shape = 's32[1]{0}', space=sflag, size = 0x4, scoped, tag = 'scoped memory for tpu_custom_call.1']
    #allocation5 [shape = 's32[1]{0}', space=sflag, size = 0x4, scoped, tag = 'scoped memory for tpu_custom_call.1']
    #allocation6 [shape = 'u8[16384]{0}', space=vmem, size = 0x4000, scoped, tag = 'input window, operand 1, single buffered']
    #allocation7 [shape = 's32[1]{0}', space=sflag, size = 0x4, scoped, tag = 'scoped memory for tpu_custom_call.1']
    #allocation8 [shape = 'u8[16384]{0}', space=vmem, size = 0x4000, scoped, tag = 'output window, operand 0, single buffered']
    %7 = vsyncpa [#allocation4], 0
    %8 = vsyncpa [#allocation7], 0
    %9 = vsyncpa [#allocation5], 0
    // Predicated region
    $region2: #{tpu_custom_call.1} parent=1 // pred_check
      _
    $region3: #{tpu_custom_call.1} parent=1 // pred_check_branch
      %11 = sbr.rel (0) target = $region5
    $region4: #{tpu_custom_call.1} parent=1 // pred_region
      %s13 = ssub.s32 512, 512
      %14 = vsyncadd [#allocation4], %s13
      %s15 = sshll.u32 [#allocation3], 4
      %s16 = int_to_ptr.vmem [resolvable:$true] %s15
      %21 = dma.hbm_to_vmem [thread:$0]  %s0, 512, %s16, [#allocation4], 128, 128, 8
    $region5: #{tpu_custom_call.1} parent=1 // pred_fallthru
      _
    // Predicated region
    $region6: #{tpu_custom_call.1} parent=1 // pred_check
      _
    $region7: #{tpu_custom_call.1} parent=1 // pred_check_branch
      %23 = sbr.rel (0) target = $region9
    $region8: #{tpu_custom_call.1} parent=1 // pred_region
      %s25 = ssub.s32 512, 512
      %26 = vsyncadd [#allocation7], %s25
      %s27 = sshll.u32 [#allocation6], 4
      %s28 = int_to_ptr.vmem [resolvable:$true] %s27
      %33 = dma.hbm_to_vmem [thread:$0]  %s1, 512, %s28, [#allocation7], 128, 128, 8
    $region9: #{tpu_custom_call.1} parent=1 // pred_fallthru
      _
    // Predicated region
    $region10: #{tpu_custom_call.1} parent=1 // pred_check
      _
    $region11: #{tpu_custom_call.1} parent=1 // pred_check_branch
      %35 = sbr.rel (0) target = $region13
    $region12: #{tpu_custom_call.1} parent=1 // pred_region
      %36 = dma.done [#allocation4], 512
    $region13: #{tpu_custom_call.1} parent=1 // pred_fallthru
      _
    // Predicated region
    $region14: #{tpu_custom_call.1} parent=1 // pred_check
      _
    $region15: #{tpu_custom_call.1} parent=1 // pred_check_branch
      %38 = sbr.rel (0) target = $region17
    $region16: #{tpu_custom_call.1} parent=1 // pred_region
      %39 = dma.done [#allocation7], 512
    $region17: #{tpu_custom_call.1} parent=1 // pred_fallthru
      _
    %p40 = scmp.eq.s32.totalorder 0, 0
    // Predicated region
    $region18: #{tpu_custom_call.1} parent=1 // pred_check
      %p41 = pneg %p40
    $region19: #{tpu_custom_call.1} parent=1 // pred_check_branch
      %43 = sbr.rel (%p41) target = $region21
    $region20: #{tpu_custom_call.1} parent=1 // pred_region
      %vm44 = vcmask 261120
      %45 = vst.msk [vmem:[#allocation2] sm:$0xff] %vm44, 0.0
      %46 = vst.msk [vmem:[#allocation2 + $0x8] sm:$0xff] %vm44, 0.0
      %47 = vst.msk [vmem:[#allocation2 + $0x10] sm:$0xff] %vm44, 0.0
      %48 = vst.msk [vmem:[#allocation2 + $0x18] sm:$0xff] %vm44, 0.0
    $region21: #{tpu_custom_call.1} parent=1 // pred_fallthru
      _
    %v49 = vld [vmem:[#allocation2] sm:$0xff]
    %v50 = vld [vmem:[#allocation2 + $0x8] sm:$0xff]
    %v51 = vld [vmem:[#allocation2 + $0x10] sm:$0xff]
    %v52 = vld [vmem:[#allocation2 + $0x18] sm:$0xff]
    %v53 = vld [vmem:[#allocation3] sm:$0xff]
    %v54 = vld [vmem:[#allocation3 + $0x8] sm:$0xff]
    %v55 = vld [vmem:[#allocation3 + $0x10] sm:$0xff]
    %v56 = vld [vmem:[#allocation3 + $0x18] sm:$0xff]
    %v57 = vld [vmem:[#allocation6] sm:$0xff]
    %v58 = vld [vmem:[#allocation6 + $0x8] sm:$0xff]
    %v59 = vld [vmem:[#allocation6 + $0x10] sm:$0xff]
    %v60 = vld [vmem:[#allocation6 + $0x18] sm:$0xff]
    %vm61 = vcmask 261120
    %v63 = vsel %vm61, %v53, 0
    %v66 = vsel %vm61, %v54, 0
    %v69 = vsel %vm61, %v55, 0
    %v72 = vsel %vm61, %v56, 0
    %74 = vmatprep.subr.mxu0 0.0
    %75 = vmatpush1.msra.mxu0 %v57
    %76 = vmatprep.subr.mxu0 0.0
    %77 = vmatpush1.msra.mxu0 %v58
    %78 = vmatprep.subr.mxu0 0.0
    %79 = vmatpush1.msra.mxu0 %v59
    %80 = vmatprep.subr.mxu0 0.0
    %81 = vmatpush1.msra.mxu0 %v60
    %82 = vmatprep.subr.mxu0 0.0
    %83 = vmatpush1.msra.mxu0 0.0
    %84 = vmatprep.subr.mxu0 0.0
    %85 = vmatpush1.msra.mxu0 0.0
    %86 = vmatprep.subr.mxu0 0.0
    %87 = vmatpush1.msra.mxu0 0.0
    %88 = vmatprep.subr.mxu0 0.0
    %89 = vmatpush1.msra.mxu0 0.0
    %90 = vmatprep.subr.mxu0 0.0
    %91 = vmatpush1.msra.mxu0 0.0
    %92 = vmatprep.subr.mxu0 0.0
    %93 = vmatpush1.msra.mxu0 0.0
    %94 = vmatprep.subr.mxu0 0.0
    %95 = vmatpush1.msra.mxu0 0.0
    %96 = vmatprep.subr.mxu0 0.0
    %97 = vmatpush1.msra.mxu0 0.0
    %98 = vmatprep.subr.mxu0 0.0
    %99 = vmatpush1.msra.mxu0 0.0
    %100 = vmatprep.subr.mxu0 0.0
    %101 = vmatpush1.msra.mxu0 0.0
    %102 = vmatprep.subr.mxu0 0.0
    %103 = vmatpush1.msra.mxu0 0.0
    %104 = vmatprep.subr.mxu0 0.0
    %105 = vmatpush1.msra.mxu0 0.0
    %106 = vmatprep.subr.mxu0 0.0
    %107 = vmatpush1.msra.mxu0 0.0
    %108 = vmatprep.subr.mxu0 0.0
    %109 = vmatpush1.msra.mxu0 0.0
    %110 = vmatprep.subr.mxu0 0.0
    %111 = vmatpush1.msra.mxu0 0.0
    %112 = vmatprep.subr.mxu0 0.0
    %113 = vmatpush1.msra.mxu0 0.0
    %114 = vmatprep.subr.mxu0 0.0
    %115 = vmatpush1.msra.mxu0 0.0
    %116 = vmatprep.subr.mxu0 0.0
    %117 = vmatpush1.msra.mxu0 0.0
    %118 = vmatprep.subr.mxu0 0.0
    %119 = vmatpush1.msra.mxu0 0.0
    %120 = vmatprep.subr.mxu0 0.0
    %121 = vmatpush1.msra.mxu0 0.0
    %122 = vmatprep.subr.mxu0 0.0
    %123 = vmatpush1.msra.mxu0 0.0
    %124 = vmatprep.subr.mxu0 0.0
    %125 = vmatpush1.msra.mxu0 0.0
    %126 = vmatprep.subr.mxu0 0.0
    %127 = vmatpush1.msra.mxu0 0.0
    %128 = vmatprep.subr.mxu0 0.0
    %129 = vmatpush1.msra.mxu0 0.0
    %130 = vmatprep.subr.mxu0 0.0
    %131 = vmatpush1.msra.mxu0 0.0
    %132 = vmatprep.subr.mxu0 0.0
    %133 = vmatpush1.msra.mxu0 0.0
    %134 = vmatprep.subr.mxu0 0.0
    %135 = vmatpush1.msra.mxu0 0.0
    %136 = vmatprep.subr.mxu0 0.0
    %137 = vmatpush1.msra.mxu0 0.0
    %138 = vmatprep.mubr.f32.mxu0 0.0
    %139 = vmatmul.mubr.f32.gmra.mrb[0].mxu0 %v63
    %v140 = vpop.f32.mrb[0].mxu0
    %v141 = vadd.f32 0.0, %v140
    %v142 = vpop.f32.mrb[0].mxu0
    %143 = vmatprep.mubr.f32.mxu0 0.0
    %144 = vmatmul.mubr.f32.gmra.mrb[0].mxu0 %v66
    %v145 = vpop.f32.mrb[0].mxu0
    %v146 = vadd.f32 0.0, %v145
    %v147 = vpop.f32.mrb[0].mxu0
    %148 = vmatprep.mubr.f32.mxu0 0.0
    %149 = vmatmul.mubr.f32.gmra.mrb[0].mxu0 %v69
    %v150 = vpop.f32.mrb[0].mxu0
    %v151 = vadd.f32 0.0, %v150
    %v152 = vpop.f32.mrb[0].mxu0
    %153 = vmatprep.mubr.f32.mxu0 0.0
    %154 = vmatmul.mubr.f32.gmra.mrb[0].mxu0 %v72
    %v155 = vpop.f32.mrb[0].mxu0
    %v156 = vadd.f32 0.0, %v155
    %v157 = vpop.f32.mrb[0].mxu0
    %158 = vdwg.mxu0
    %v159 = vadd.f32 %v49, %v141
    %v160 = vadd.f32 %v50, %v146
    %v161 = vadd.f32 %v51, %v151
    %v162 = vadd.f32 %v52, %v156
    %163 = vst.msk [vmem:[#allocation2] sm:$0xff] %vm61, %v159
    %164 = vst.msk [vmem:[#allocation2 + $0x8] sm:$0xff] %vm61, %v160
    %165 = vst.msk [vmem:[#allocation2 + $0x10] sm:$0xff] %vm61, %v161
    %166 = vst.msk [vmem:[#allocation2 + $0x18] sm:$0xff] %vm61, %v162
    // Predicated region
    $region22: #{tpu_custom_call.1} parent=1 // pred_check
      %p167 = pneg %p40
    $region23: #{tpu_custom_call.1} parent=1 // pred_check_branch
      %169 = sbr.rel (%p167) target = $region25
    $region24: #{tpu_custom_call.1} parent=1 // pred_region
      %v170 = vld [vmem:[#allocation2] sm:$0xff]
      %v171 = vld [vmem:[#allocation2 + $0x8] sm:$0xff]
      %v172 = vld [vmem:[#allocation2 + $0x10] sm:$0xff]
      %v173 = vld [vmem:[#allocation2 + $0x18] sm:$0xff]
      %174 = vst.msk [vmem:[#allocation8] sm:$0xff] %vm61, %v170
      %175 = vst.msk [vmem:[#allocation8 + $0x8] sm:$0xff] %vm61, %v171
      %176 = vst.msk [vmem:[#allocation8 + $0x10] sm:$0xff] %vm61, %v172
      %177 = vst.msk [vmem:[#allocation8 + $0x18] sm:$0xff] %vm61, %v173
    $region25: #{tpu_custom_call.1} parent=1 // pred_fallthru
      _
    // Predicated region
    $region26: #{tpu_custom_call.1} parent=1 // pred_check
      _
    $region27: #{tpu_custom_call.1} parent=1 // pred_check_branch
      %179 = sbr.rel (0) target = $region29
    $region28: #{tpu_custom_call.1} parent=1 // pred_region
      %s181 = ssub.s32 512, 512
      %182 = vsyncadd [#allocation5], %s181
      %s183 = sshll.u32 [#allocation8], 4
      %s184 = int_to_ptr.vmem [resolvable:$true] %s183
      %189 = dma.vmem_to_hbm [thread:$0]  %s184, 512, %s2, [#allocation5], 128, 128, 8
    $region29: #{tpu_custom_call.1} parent=1 // pred_fallthru
      _
    // Predicated region
    $region30: #{tpu_custom_call.1} parent=1 // pred_check
      _
    $region31: #{tpu_custom_call.1} parent=1 // pred_check_branch
      %191 = sbr.rel (0) target = $region33
    $region32: #{tpu_custom_call.1} parent=1 // pred_region
      %192 = dma.done [#allocation5], 512
    $region33: #{tpu_custom_call.1} parent=1 // pred_fallthru
      _
    %193 = vsyncpa [#allocation4], 1
    %194 = vsyncpa [#allocation7], 1
    %195 = vsyncpa [#allocation5], 1

</llo_original>
